<compile_context>
chip_gen: v6e
topology: v6e:2x2x1
jax: 0.10.0
libtpu: 0.0.40
codegen_flags: <defaults>
</compile_context>

<pallas_src>
import functools

import jax
import jax.numpy as jnp
from jax.experimental import pallas as pl
from jax.experimental.pallas import tpu as pltpu


def _cg_block_kernel(s_ref, c_ref, w1s_ref, w2s_ref, bs_ref, *rest,
                     agg_mode, identity_c_mlp, fold_rows):
    """One grid step processes TB batch elements.

    s_ref:     (TB, N, D)        compute dtype (bf16)
    c_ref:     (TB, D) or (TB,1,D)  compute dtype (raw context rows)
    w1s_ref:   (D, D)  compute dtype      w2s_ref: (D, D)
    bs_ref:    (2, D)  f32  (row 0: layer-1 bias, row 1: layer-2 bias)
    [w1c_ref, w2c_ref, bc_ref]   same layout for the c-MLP (absent if identity)
    s_out_ref: (TB, N, D)  output dtype
    agg_ref:   (TB, D) or (TB,1,D)  output dtype
    """
    if identity_c_mlp:
        s_out_ref, agg_ref = rest
    else:
        w1c_ref, w2c_ref, bc_ref, s_out_ref, agg_ref = rest

    tb, n, d = s_ref.shape
    cdt = s_ref.dtype

    # --- s-MLP: f32 MXU accumulation, bf16 hidden activation -----------------
    if fold_rows:
        # Free view: N is a multiple of the sublane pack, so (tb, n, d) ->
        # (tb*n, d) costs nothing and gives one big-M matmul per layer.
        x = s_ref[...].reshape(tb * n, d)
        h = jnp.dot(x, w1s_ref[...], preferred_element_type=jnp.float32)
        h = jnp.maximum(h + bs_ref[0:1, :], 0.0).astype(cdt)
        y = jnp.dot(h, w2s_ref[...], preferred_element_type=jnp.float32)
        s_mlp = (y + bs_ref[1:2, :]).reshape(tb, n, d)
    else:
        # N not sublane-packable: keep the 3-D contraction rather than forcing
        # a per-step VMEM relayout copy of the whole s block.
        x = s_ref[...]
        h = jax.lax.dot_general(x, w1s_ref[...], (((2,), (0,)), ((), ())),
                                preferred_element_type=jnp.float32)
        h = jnp.maximum(h + bs_ref[0:1, :], 0.0).astype(cdt)
        y = jax.lax.dot_general(h, w2s_ref[...], (((2,), (0,)), ((), ())),
                                preferred_element_type=jnp.float32)
        s_mlp = y + bs_ref[1:2, :]

    # --- c-MLP (folded in; grid-invariant weights) or identity ---------------
    c_rows = c_ref[...].reshape(tb, d)                      # (TB, D)
    if identity_c_mlp:
        c_gate = c_rows.astype(jnp.float32)
    else:
        hc = jnp.dot(c_rows, w1c_ref[...], preferred_element_type=jnp.float32)
        hc = jnp.maximum(hc + bc_ref[0:1, :], 0.0).astype(cdt)
        c_gate = jnp.dot(hc, w2c_ref[...], preferred_element_type=jnp.float32)
        c_gate = c_gate + bc_ref[1:2, :]

    # --- gating: broadcast each batch's context row over its N set rows ------
    gated = s_mlp * c_gate[:, None, :]                      # f32 (TB, N, D)

    # --- aggregation over the set dim (block carries the FULL N: max never
    #     sees padding garbage, mean divides by the true N) -------------------
    if agg_mode == 'max':
        agg = jnp.max(gated, axis=1)
    elif agg_mode in ('mean', 'avg'):
        agg = jnp.mean(gated, axis=1)
    else:
        raise ValueError('Unknown agg mode for MCG')

    s_out_ref[...] = gated.astype(s_out_ref.dtype)
    agg_ref[...] = agg.reshape(agg_ref.shape).astype(agg_ref.dtype)


def _pick_batch_block(B, N, D, in_itemsize, out_itemsize, budget_bytes):
    """Pick the batch tile TB.

    True per-element VMEM footprint of one grid step: double-buffered bf16
    input + double-buffered output + ~3 f32 temporaries (h, s_mlp, gated),
    plus the small c / agg rows.  Prefer the SMALLEST tile that already
    saturates the MXU (TB*N >= 256 rows) and the DMA engine (>= 1 MiB streamed
    per step); otherwise the LARGEST divisor of B that fits (grid=(1,) for
    tiny problems, which removes per-step pipeline overhead entirely).
    """
    per_elem = (N + 1) * D * (2 * in_itemsize + 2 * out_itemsize + 3 * 4)
    fits = [t for t in range(1, B + 1)
            if B % t == 0 and t * per_elem <= budget_bytes]
    if not fits:
        # Even one element overflows the budget; return 1 and let the compiler
        # surface a clear VMEM error (correctness is unaffected).
        return 1
    good = [t for t in fits
            if t * N >= 256 and t * N * D * in_itemsize >= (1 << 20)]
    return min(good) if good else max(fits)


def cg_block(s, c, params, *, agg_mode='max', identity_c_mlp=False,
             batch_block=None, compute_dtype=jnp.bfloat16):
    """s: (B, N, D), c: (B, 1, D). Returns (gated_s (B,N,D), aggregated_c (B,1,D))
    in the dtype of `s`."""
    B, N, D = s.shape
    assert c.shape == (B, 1, D)
    out_dtype = s.dtype
    w1s, b1s, w2s, b2s, w1c, b1c, w2c, b2c = params

    cdt = jnp.dtype(compute_dtype)
    in_itemsize = cdt.itemsize
    out_itemsize = jnp.dtype(out_dtype).itemsize

    s_in = s.astype(cdt)
    w1s_c, w2s_c = w1s.astype(cdt), w2s.astype(cdt)
    bias_s = jnp.stack([b1s, b2s], axis=0).astype(jnp.float32)      # (2, D)

    n_mlps = 1
    if not identity_c_mlp:
        w1c_c, w2c_c = w1c.astype(cdt), w2c.astype(cdt)
        bias_c = jnp.stack([b1c, b2c], axis=0).astype(jnp.float32)
        n_mlps = 2
    weight_bytes = n_mlps * (2 * D * D * in_itemsize + 2 * D * 4)

    # ---- generation-aware VMEM budgeting ------------------------------------
    try:
        vmem_capacity = int(pltpu.get_tpu_info().vmem_capacity_bytes)
    except Exception:
        vmem_capacity = 64 << 20                    # conservative (v7x-sized)
    if vmem_capacity >= (128 << 20):                # v5e / v6e
        vmem_limit = 96 << 20
    else:                                           # v7x: leave Mosaic scratch room
        vmem_limit = min(48 << 20, max(int(0.75 * vmem_capacity), 16 << 20))

    if batch_block is None:
        # Weights may be double-buffered (count 2x unless single-buffered below).
        budget = max(int(0.7 * vmem_limit) - 2 * weight_bytes, 0)
        batch_block = _pick_batch_block(B, N, D, in_itemsize, out_itemsize, budget)
    assert B % batch_block == 0, "batch_block must divide the batch size"
    tb = batch_block
    grid = (B // tb,)

    # (tb, n, d) -> (tb*n, d) is a free view only when N is a multiple of the
    # sublane pack (16 for bf16, 8 for f32).
    sublane_pack = 32 // in_itemsize
    fold_rows = (N % sublane_pack == 0)

    # Lane-dense 2-D layout for the c / aggregated_c streams whenever the block
    # satisfies the (8, 128) rule; (tb, 1, D) fallback otherwise.
    c_is_2d = (tb == B) or (tb % 8 == 0)
    if c_is_2d:
        c_in = c.reshape(B, D).astype(cdt)
        c_spec = pl.BlockSpec((tb, D), lambda b: (b, 0))
        agg_shape = (B, D)
        agg_spec = pl.BlockSpec((tb, D), lambda b: (b, 0))
    else:
        c_in = c.astype(cdt)
        c_spec = pl.BlockSpec((tb, 1, D), lambda b: (b, 0, 0))
        agg_shape = (B, 1, D)
        agg_spec = pl.BlockSpec((tb, 1, D), lambda b: (b, 0, 0))

    # Grid-invariant weight/bias specs.  Single-buffer them only when the
    # wasted second buffer is material (> 2 MiB, i.e. large D on v7x); at tiny
    # D the default double-buffering is harmless and maximally portable.
    single_buffer_weights = weight_bytes > (2 << 20)

    def invariant_spec(shape):
        idx = lambda b: tuple(0 for _ in shape)
        if single_buffer_weights:
            return pl.BlockSpec(shape, idx, pipeline_mode=pl.Buffered(1))
        return pl.BlockSpec(shape, idx)

    inputs = [s_in, c_in, w1s_c, w2s_c, bias_s]
    in_specs = [
        pl.BlockSpec((tb, N, D), lambda b: (b, 0, 0)),   # s (bf16)
        c_spec,                                          # raw c rows (bf16)
        invariant_spec((D, D)),                          # w1 (s-MLP)
        invariant_spec((D, D)),                          # w2 (s-MLP)
        invariant_spec((2, D)),                          # packed s biases (f32)
    ]
    if not identity_c_mlp:
        inputs += [w1c_c, w2c_c, bias_c]
        in_specs += [invariant_spec((D, D)),             # w1 (c-MLP)
                     invariant_spec((D, D)),             # w2 (c-MLP)
                     invariant_spec((2, D))]             # packed c biases (f32)

    out_shapes = (jax.ShapeDtypeStruct((B, N, D), out_dtype),
                  jax.ShapeDtypeStruct(agg_shape, out_dtype))
    out_specs = [pl.BlockSpec((tb, N, D), lambda b: (b, 0, 0)), agg_spec]

    kernel = functools.partial(_cg_block_kernel, agg_mode=agg_mode,
                               identity_c_mlp=identity_c_mlp,
                               fold_rows=fold_rows)

    grid_spec = pltpu.PrefetchScalarGridSpec(
        num_scalar_prefetch=0, grid=grid,
        in_specs=in_specs, out_specs=out_specs)

    mlp_flops = 4 * B * N * D * D + (0 if identity_c_mlp else 4 * B * D * D)
    cost = pl.CostEstimate(
        flops=mlp_flops + 2 * B * N * D,
        transcendentals=0,
        bytes_accessed=(B * N * D * (in_itemsize + out_itemsize)   # s in/out
                        + B * D * (in_itemsize + out_itemsize)     # c in / agg out
                        + weight_bytes),
    )

    gated, agg = pl.pallas_call(
        kernel,
        out_shape=out_shapes,
        grid_spec=grid_spec,
        compiler_params=pltpu.CompilerParams(
            dimension_semantics=("parallel",),
            vmem_limit_bytes=vmem_limit),
        cost_estimate=cost,
    )(*inputs)

    return gated, agg.reshape(B, 1, D)


def _init_linear(key, n_in, n_out):
    """PyTorch nn.Linear-style init: U(-1/sqrt(fan_in), 1/sqrt(fan_in)).
    Weight stored as (n_in, n_out) so the kernel does x @ W + b."""
    kw, kb = jax.random.split(key)
    bound = 1.0 / jnp.sqrt(n_in)
    w = jax.random.uniform(kw, (n_in, n_out), jnp.float32, -bound, bound)
    b = jax.random.uniform(kb, (n_out,), jnp.float32, -bound, bound)
    return w, b


def _reference(s, c, params, agg_mode, identity_c_mlp):
    f32 = lambda x: x.astype(jnp.float32)
    w1s, b1s, w2s, b2s, w1c, b1c, w2c, b2c = [f32(p) for p in params]
    sm = jnp.maximum(f32(s) @ w1s + b1s, 0.0) @ w2s + b2s
    if identity_c_mlp:
        cm = f32(c)
    else:
        cm = jnp.maximum(f32(c) @ w1c + b1c, 0.0) @ w2c + b2c
    gated = sm * cm
    if agg_mode == 'max':
        agg = jnp.max(gated, axis=-2, keepdims=True)
    else:
        agg = jnp.mean(gated, axis=-2, keepdims=True)
    return gated, agg


if __name__ == "__main__":
    # CGBlock config: mlp(n_layers=2, n_in=n_out=D, batchnorm=False,
    # dropout=False -> eval), identity_c_mlp=False, agg_mode='max'.
    B, N, D = 4, 16, 128        # batch, set size, hidden; D multiple of 128
    agg_mode = 'max'
    identity_c_mlp = False

    key = jax.random.PRNGKey(0)
    ks, kc, k1, k2, k3, k4 = jax.random.split(key, 6)

    # bf16 inputs / weights (the kernel accumulates in f32 on the MXU).
    s = jax.random.normal(ks, (B, N, D), jnp.float32).astype(jnp.bfloat16)
    c = jax.random.normal(kc, (B, 1, D), jnp.float32).astype(jnp.bfloat16)

    w1s, b1s = _init_linear(k1, D, D)
    w2s, b2s = _init_linear(k2, D, D)
    w1c, b1c = _init_linear(k3, D, D)
    w2c, b2c = _init_linear(k4, D, D)
    bf = lambda x: x.astype(jnp.bfloat16)
    params = (bf(w1s), b1s, bf(w2s), b2s, bf(w1c), b1c, bf(w2c), b2c)

    fn = jax.jit(functools.partial(cg_block, agg_mode=agg_mode,
                                   identity_c_mlp=identity_c_mlp))
    s_out, agg_c = fn(s, c, params)
    jax.block_until_ready((s_out, agg_c))

    s_ref, agg_ref = _reference(s, c, params, agg_mode, identity_c_mlp)
    assert s_out.shape == (B, N, D) and agg_c.shape == (B, 1, D)
    assert s_out.dtype == s.dtype and agg_c.dtype == s.dtype
    assert jnp.allclose(s_out.astype(jnp.float32), s_ref, atol=2e-2, rtol=2e-2)
    assert jnp.allclose(agg_c.astype(jnp.float32), agg_ref, atol=2e-2, rtol=2e-2)

    print("KERNEL_OK")
</pallas_src>

<mosaic_0001>
module attributes {stable_mosaic.version = 11 : i64} {
  func.func @_cg_block_kernel(%arg0: i32, %arg1: memref<4x16x128xbf16, #tpu.memory_space<vmem>>, %arg2: memref<4x128xbf16, #tpu.memory_space<vmem>>, %arg3: memref<128x128xbf16, #tpu.memory_space<vmem>>, %arg4: memref<128x128xbf16, #tpu.memory_space<vmem>>, %arg5: memref<2x128xf32, #tpu.memory_space<vmem>>, %arg6: memref<128x128xbf16, #tpu.memory_space<vmem>>, %arg7: memref<128x128xbf16, #tpu.memory_space<vmem>>, %arg8: memref<2x128xf32, #tpu.memory_space<vmem>>, %arg9: memref<4x16x128xbf16, #tpu.memory_space<vmem>>, %arg10: memref<4x128xbf16, #tpu.memory_space<vmem>>) attributes {dimension_semantics = [#tpu.dimension_semantics<parallel>], iteration_bounds = array<i64: 1>, scalar_prefetch = 0 : i64, scratch_operands = 0 : i64, tpu.core_type = #tpu.core_type<tc>, window_params = [{transform_indices = @transform_0, window_bounds = array<i64: 4, 16, 128>}, {transform_indices = @transform_1, window_bounds = array<i64: 4, 128>}, {pipeline_mode = #tpu.pipeline_mode<synchronous>, transform_indices = @transform_2, window_bounds = array<i64: 128, 128>}, {pipeline_mode = #tpu.pipeline_mode<synchronous>, transform_indices = @transform_3, window_bounds = array<i64: 128, 128>}, {pipeline_mode = #tpu.pipeline_mode<synchronous>, transform_indices = @transform_4, window_bounds = array<i64: 2, 128>}, {pipeline_mode = #tpu.pipeline_mode<synchronous>, transform_indices = @transform_5, window_bounds = array<i64: 128, 128>}, {pipeline_mode = #tpu.pipeline_mode<synchronous>, transform_indices = @transform_6, window_bounds = array<i64: 128, 128>}, {pipeline_mode = #tpu.pipeline_mode<synchronous>, transform_indices = @transform_7, window_bounds = array<i64: 2, 128>}, {transform_indices = @transform_8, window_bounds = array<i64: 4, 16, 128>}, {transform_indices = @transform_9, window_bounds = array<i64: 4, 128>}]} {
    %c0 = arith.constant 0 : index
    %c0_0 = arith.constant 0 : index
    %c0_1 = arith.constant 0 : index
    %0 = vector.load %arg1[%c0, %c0_0, %c0_1] : memref<4x16x128xbf16, #tpu.memory_space<vmem>>, vector<4x16x128xbf16>
    %1 = vector.shape_cast %0 : vector<4x16x128xbf16> to vector<64x128xbf16>
    %c0_2 = arith.constant 0 : index
    %c0_3 = arith.constant 0 : index
    %2 = vector.load %arg3[%c0_2, %c0_3] : memref<128x128xbf16, #tpu.memory_space<vmem>>, vector<128x128xbf16>
    %cst = arith.constant dense<0.000000e+00> : vector<64x128xf32>
    %3 = tpu.matmul %1, %2, %cst {dimension_numbers = #tpu.dot_dimension_numbers<[1], [0], [0], [1], [0, 0, 1, 1], [], []>} : vector<64x128xbf16>, vector<128x128xbf16>, vector<64x128xf32> -> vector<64x128xf32>
    %c0_4 = arith.constant 0 : index
    %c0_5 = arith.constant 0 : index
    %4 = vector.load %arg5[%c0_4, %c0_5] : memref<2x128xf32, #tpu.memory_space<vmem>>, vector<1x128xf32>
    %5 = vector.broadcast %4 : vector<1x128xf32> to vector<64x128xf32>
    %6 = arith.addf %3, %5 : vector<64x128xf32>
    %cst_6 = arith.constant 0.000000e+00 : f32
    %7 = vector.broadcast %cst_6 : f32 to vector<64x128xf32>
    %8 = arith.maximumf %6, %7 : vector<64x128xf32>
    %9 = arith.truncf %8 : vector<64x128xf32> to vector<64x128xbf16>
    %c0_7 = arith.constant 0 : index
    %c0_8 = arith.constant 0 : index
    %10 = vector.load %arg4[%c0_7, %c0_8] : memref<128x128xbf16, #tpu.memory_space<vmem>>, vector<128x128xbf16>
    %cst_9 = arith.constant dense<0.000000e+00> : vector<64x128xf32>
    %11 = tpu.matmul %9, %10, %cst_9 {dimension_numbers = #tpu.dot_dimension_numbers<[1], [0], [0], [1], [0, 0, 1, 1], [], []>} : vector<64x128xbf16>, vector<128x128xbf16>, vector<64x128xf32> -> vector<64x128xf32>
    %c1 = arith.constant 1 : index
    %c0_10 = arith.constant 0 : index
    %12 = vector.load %arg5[%c1, %c0_10] : memref<2x128xf32, #tpu.memory_space<vmem>>, vector<1x128xf32>
    %13 = vector.broadcast %12 : vector<1x128xf32> to vector<64x128xf32>
    %14 = arith.addf %11, %13 : vector<64x128xf32>
    %15 = vector.shape_cast %14 : vector<64x128xf32> to vector<4x16x128xf32>
    %c0_11 = arith.constant 0 : index
    %c0_12 = arith.constant 0 : index
    %16 = vector.load %arg2[%c0_11, %c0_12] : memref<4x128xbf16, #tpu.memory_space<vmem>>, vector<4x128xbf16>
    %c0_13 = arith.constant 0 : index
    %c0_14 = arith.constant 0 : index
    %17 = vector.load %arg6[%c0_13, %c0_14] : memref<128x128xbf16, #tpu.memory_space<vmem>>, vector<128x128xbf16>
    %cst_15 = arith.constant dense<0.000000e+00> : vector<4x128xf32>
    %18 = tpu.matmul %16, %17, %cst_15 {dimension_numbers = #tpu.dot_dimension_numbers<[1], [0], [0], [1], [0, 0, 1, 1], [], []>} : vector<4x128xbf16>, vector<128x128xbf16>, vector<4x128xf32> -> vector<4x128xf32>
    %c0_16 = arith.constant 0 : index
    %c0_17 = arith.constant 0 : index
    %19 = vector.load %arg8[%c0_16, %c0_17] : memref<2x128xf32, #tpu.memory_space<vmem>>, vector<1x128xf32>
    %20 = vector.broadcast %19 : vector<1x128xf32> to vector<4x128xf32>
    %21 = arith.addf %18, %20 : vector<4x128xf32>
    %cst_18 = arith.constant 0.000000e+00 : f32
    %22 = vector.broadcast %cst_18 : f32 to vector<4x128xf32>
    %23 = arith.maximumf %21, %22 : vector<4x128xf32>
    %24 = arith.truncf %23 : vector<4x128xf32> to vector<4x128xbf16>
    %c0_19 = arith.constant 0 : index
    %c0_20 = arith.constant 0 : index
    %25 = vector.load %arg7[%c0_19, %c0_20] : memref<128x128xbf16, #tpu.memory_space<vmem>>, vector<128x128xbf16>
    %cst_21 = arith.constant dense<0.000000e+00> : vector<4x128xf32>
    %26 = tpu.matmul %24, %25, %cst_21 {dimension_numbers = #tpu.dot_dimension_numbers<[1], [0], [0], [1], [0, 0, 1, 1], [], []>} : vector<4x128xbf16>, vector<128x128xbf16>, vector<4x128xf32> -> vector<4x128xf32>
    %c1_22 = arith.constant 1 : index
    %c0_23 = arith.constant 0 : index
    %27 = vector.load %arg8[%c1_22, %c0_23] : memref<2x128xf32, #tpu.memory_space<vmem>>, vector<1x128xf32>
    %28 = vector.broadcast %27 : vector<1x128xf32> to vector<4x128xf32>
    %29 = arith.addf %26, %28 : vector<4x128xf32>
    %30 = vector.shape_cast %29 : vector<4x128xf32> to vector<4x1x128xf32>
    %31 = vector.broadcast %30 : vector<4x1x128xf32> to vector<4x16x128xf32>
    %32 = arith.mulf %15, %31 : vector<4x16x128xf32>
    %cst_24 = arith.constant dense<0xFF800000> : vector<4x128xf32>
    %33 = vector.multi_reduction <maximumf>, %32, %cst_24 [1] : vector<4x16x128xf32> to vector<4x128xf32>
    %34 = arith.truncf %32 : vector<4x16x128xf32> to vector<4x16x128xbf16>
    %c0_25 = arith.constant 0 : index
    %c0_26 = arith.constant 0 : index
    %c0_27 = arith.constant 0 : index
    %35 = vector.load %arg9[%c0_25, %c0_26, %c0_27] : memref<4x16x128xbf16, #tpu.memory_space<vmem>>, vector<4x16x128xbf16>
    tpu.vector_store %arg9[%c0_25, %c0_26, %c0_27], %34 {strides = array<i32>} : memref<4x16x128xbf16, #tpu.memory_space<vmem>>, vector<4x16x128xbf16>,
    %36 = arith.truncf %33 : vector<4x128xf32> to vector<4x128xbf16>
    %c0_28 = arith.constant 0 : index
    %c0_29 = arith.constant 0 : index
    %37 = vector.load %arg10[%c0_28, %c0_29] : memref<4x128xbf16, #tpu.memory_space<vmem>>, vector<4x128xbf16>
    tpu.vector_store %arg10[%c0_28, %c0_29], %36 {strides = array<i32>} : memref<4x128xbf16, #tpu.memory_space<vmem>>, vector<4x128xbf16>,
    return
  }
  func.func @transform_0(%arg0: i32) -> (i32, i32, i32) {
    %c0_i32 = arith.constant 0 : i32
    %c0_i32_0 = arith.constant 0 : i32
    %c0_i32_1 = arith.constant 0 : i32
    return %arg0, %c0_i32, %c0_i32_0 : i32, i32, i32
  }
  func.func @transform_1(%arg0: i32) -> (i32, i32) {
    %c0_i32 = arith.constant 0 : i32
    %c0_i32_0 = arith.constant 0 : i32
    return %arg0, %c0_i32 : i32, i32
  }
  func.func @transform_2(%arg0: i32) -> (i32, i32) {
    %c0_i32 = arith.constant 0 : i32
    %c0_i32_0 = arith.constant 0 : i32
    %c0_i32_1 = arith.constant 0 : i32
    return %c0_i32, %c0_i32_0 : i32, i32
  }
  func.func @transform_3(%arg0: i32) -> (i32, i32) {
    %c0_i32 = arith.constant 0 : i32
    %c0_i32_0 = arith.constant 0 : i32
    %c0_i32_1 = arith.constant 0 : i32
    return %c0_i32, %c0_i32_0 : i32, i32
  }
  func.func @transform_4(%arg0: i32) -> (i32, i32) {
    %c0_i32 = arith.constant 0 : i32
    %c0_i32_0 = arith.constant 0 : i32
    %c0_i32_1 = arith.constant 0 : i32
    return %c0_i32, %c0_i32_0 : i32, i32
  }
  func.func @transform_5(%arg0: i32) -> (i32, i32) {
    %c0_i32 = arith.constant 0 : i32
    %c0_i32_0 = arith.constant 0 : i32
    %c0_i32_1 = arith.constant 0 : i32
    return %c0_i32, %c0_i32_0 : i32, i32
  }
  func.func @transform_6(%arg0: i32) -> (i32, i32) {
    %c0_i32 = arith.constant 0 : i32
    %c0_i32_0 = arith.constant 0 : i32
    %c0_i32_1 = arith.constant 0 : i32
    return %c0_i32, %c0_i32_0 : i32, i32
  }
  func.func @transform_7(%arg0: i32) -> (i32, i32) {
    %c0_i32 = arith.constant 0 : i32
    %c0_i32_0 = arith.constant 0 : i32
    %c0_i32_1 = arith.constant 0 : i32
    return %c0_i32, %c0_i32_0 : i32, i32
  }
  func.func @transform_8(%arg0: i32) -> (i32, i32, i32) {
    %c0_i32 = arith.constant 0 : i32
    %c0_i32_0 = arith.constant 0 : i32
    %c0_i32_1 = arith.constant 0 : i32
    return %arg0, %c0_i32, %c0_i32_0 : i32, i32, i32
  }
  func.func @transform_9(%arg0: i32) -> (i32, i32) {
    %c0_i32 = arith.constant 0 : i32
    %c0_i32_0 = arith.constant 0 : i32
    return %arg0, %c0_i32 : i32, i32
  }
}

</mosaic_0001>

<llo_original>
// kernel: cg_block.1
$region0: #{cg_block.1}
  #allocation0 [shape = 'u32[]', space=smem, size = 0x4, offset = 0x4, fixed_abs, tag = 'smem constant byte address 0x4 - core index']
  #allocation1 [shape = 'u32[144,128]{1,0:T(1,128)}', space=vmem, size = 0x12000, scoped, tag = 'internal scratch']
  %s0 = inlined_call_operand.hbm [shape: bf16[4,16,128], index: 0, kind: input, shape index: {}]
  %s1 = inlined_call_operand.vmem [shape: bf16[4,128], index: 1, kind: input, shape index: {}]
  %s2 = inlined_call_operand.hbm [shape: bf16[128,128], index: 2, kind: input, shape index: {}]
  %s3 = inlined_call_operand.hbm [shape: bf16[128,128], index: 3, kind: input, shape index: {}]
  %s4 = inlined_call_operand.vmem [shape: f32[2,128], index: 4, kind: input, shape index: {}]
  %s5 = inlined_call_operand.hbm [shape: bf16[128,128], index: 5, kind: input, shape index: {}]
  %s6 = inlined_call_operand.hbm [shape: bf16[128,128], index: 6, kind: input, shape index: {}]
  %s7 = inlined_call_operand.vmem [shape: f32[2,128], index: 7, kind: input, shape index: {}]
  %s8 = inlined_call_operand.hbm [shape: bf16[4,16,128], index: 8, kind: output, shape index: {0}]
  %s9 = inlined_call_operand.hbm [shape: bf16[4,128], index: 9, kind: output, shape index: {1}]
  %10 = xla_tuple %s8, %s9
  %s11 = sld [smem:[#allocation0]]
  $region70: #{cg_block.1} parent=0
    _
  %s13 = ssub.s32 1, %s11
  %s14 = scalar_select 0, %s13, %s11
  $region1: #{cg_block.1} parent=0
    #allocation2 [shape = 'u8[16384]{0}', space=vmem, size = 0x4000, scoped, tag = 'input window, operand 0, single buffered']
    #allocation3 [shape = 's32[1]{0}', space=sflag, size = 0x4, scoped, tag = 'scoped memory for cg_block.1']
    #allocation4 [shape = 's32[1]{0}', space=sflag, size = 0x4, scoped, tag = 'scoped memory for cg_block.1']
    #allocation5 [shape = 'u8[32768]{0}', space=vmem, size = 0x8000, scoped, tag = 'input window, operand 2, single buffered']
    #allocation6 [shape = 's32[1]{0}', space=sflag, size = 0x4, scoped, tag = 'scoped memory for cg_block.1']
    #allocation7 [shape = 'u8[32768]{0}', space=vmem, size = 0x8000, scoped, tag = 'input window, operand 3, single buffered']
    #allocation8 [shape = 'u8[32768]{0}', space=vmem, size = 0x8000, scoped, tag = 'input window, operand 5, single buffered']
    #allocation9 [shape = 's32[1]{0}', space=sflag, size = 0x4, scoped, tag = 'scoped memory for cg_block.1']
    #allocation10 [shape = 'u8[32768]{0}', space=vmem, size = 0x8000, scoped, tag = 'input window, operand 6, single buffered']
    #allocation11 [shape = 'u8[16384]{0}', space=vmem, size = 0x4000, scoped, tag = 'output window, operand 0, single buffered']
    #allocation12 [shape = 'u8[1024]{0}', space=vmem, size = 0x400, scoped, tag = 'output window, operand 1, single buffered']
    #allocation13 [shape = 's32[1]{0}', space=sflag, size = 0x4, scoped, tag = 'scoped memory for cg_block.1']
    %15 = vsyncpa [#allocation3], 0
    %16 = vsyncpa [#allocation6], 0
    %17 = vsyncpa [#allocation9], 0
    %18 = vsyncpa [#allocation4], 0
    %19 = vsyncpa [#allocation13], 0
    // Predicated region
    $region2: #{cg_block.1} parent=1 // pred_check
      _
    $region3: #{cg_block.1} parent=1 // pred_check_branch
      %21 = sbr.rel (0) target = $region5
    $region4: #{cg_block.1} parent=1 // pred_region
      %s23 = ssub.s32 512, 512
      %24 = vsyncadd [#allocation3], %s23
      %s25 = sshll.u32 [#allocation2], 4
      %s26 = int_to_ptr.vmem [resolvable:$true] %s25
      %31 = dma.hbm_to_vmem [thread:$0]  %s0, 512, %s26, [#allocation3], 64, 64, 4
    $region5: #{cg_block.1} parent=1 // pred_fallthru
      _
    // Predicated region
    $region6: #{cg_block.1} parent=1 // pred_check
      _
    $region7: #{cg_block.1} parent=1 // pred_check_branch
      %33 = sbr.rel (0) target = $region9
    $region8: #{cg_block.1} parent=1 // pred_region
      _
    $region9: #{cg_block.1} parent=1 // pred_fallthru
      _
    // Predicated region
    $region10: #{cg_block.1} parent=1 // pred_check
      _
    $region11: #{cg_block.1} parent=1 // pred_check_branch
      %35 = sbr.rel (0) target = $region13
    $region12: #{cg_block.1} parent=1 // pred_region
      %s37 = ssub.s32 1024, 1024
      %38 = vsyncadd [#allocation6], %s37
      %s39 = sshll.u32 [#allocation5], 4
      %s40 = int_to_ptr.vmem [resolvable:$true] %s39
      %45 = dma.hbm_to_vmem [thread:$0]  %s2, 1024, %s40, [#allocation6], 64, 64, 4
    $region13: #{cg_block.1} parent=1 // pred_fallthru
      _
    // Predicated region
    $region14: #{cg_block.1} parent=1 // pred_check
      _
    $region15: #{cg_block.1} parent=1 // pred_check_branch
      %47 = sbr.rel (0) target = $region17
    $region16: #{cg_block.1} parent=1 // pred_region
      %s49 = ssub.s32 1024, 1024
      %50 = vsyncadd [#allocation6], %s49
      %s51 = sshll.u32 [#allocation7], 4
      %s52 = int_to_ptr.vmem [resolvable:$true] %s51
      %57 = dma.hbm_to_vmem [thread:$0]  %s3, 1024, %s52, [#allocation6], 64, 64, 4
    $region17: #{cg_block.1} parent=1 // pred_fallthru
      _
    // Predicated region
    $region18: #{cg_block.1} parent=1 // pred_check
      _
    $region19: #{cg_block.1} parent=1 // pred_check_branch
      %59 = sbr.rel (0) target = $region21
    $region20: #{cg_block.1} parent=1 // pred_region
      _
    $region21: #{cg_block.1} parent=1 // pred_fallthru
      _
    // Predicated region
    $region22: #{cg_block.1} parent=1 // pred_check
      _
    $region23: #{cg_block.1} parent=1 // pred_check_branch
      %61 = sbr.rel (0) target = $region25
    $region24: #{cg_block.1} parent=1 // pred_region
      %s63 = ssub.s32 1024, 1024
      %64 = vsyncadd [#allocation9], %s63
      %s65 = sshll.u32 [#allocation8], 4
      %s66 = int_to_ptr.vmem [resolvable:$true] %s65
      %71 = dma.hbm_to_vmem [thread:$0]  %s5, 1024, %s66, [#allocation9], 64, 64, 4
    $region25: #{cg_block.1} parent=1 // pred_fallthru
      _
    // Predicated region
    $region26: #{cg_block.1} parent=1 // pred_check
      _
    $region27: #{cg_block.1} parent=1 // pred_check_branch
      %73 = sbr.rel (0) target = $region29
    $region28: #{cg_block.1} parent=1 // pred_region
      %s75 = ssub.s32 1024, 1024
      %76 = vsyncadd [#allocation9], %s75
      %s77 = sshll.u32 [#allocation10], 4
      %s78 = int_to_ptr.vmem [resolvable:$true] %s77
      %83 = dma.hbm_to_vmem [thread:$0]  %s6, 1024, %s78, [#allocation9], 64, 64, 4
    $region29: #{cg_block.1} parent=1 // pred_fallthru
      _
    // Predicated region
    $region30: #{cg_block.1} parent=1 // pred_check
      _
    $region31: #{cg_block.1} parent=1 // pred_check_branch
      %85 = sbr.rel (0) target = $region33
    $region32: #{cg_block.1} parent=1 // pred_region
      _
    $region33: #{cg_block.1} parent=1 // pred_fallthru
      _
    // Predicated region
    $region34: #{cg_block.1} parent=1 // pred_check
      _
    $region35: #{cg_block.1} parent=1 // pred_check_branch
      %87 = sbr.rel (0) target = $region37
    $region36: #{cg_block.1} parent=1 // pred_region
      %88 = dma.done [#allocation3], 512
    $region37: #{cg_block.1} parent=1 // pred_fallthru
      _
    // Predicated region
    $region38: #{cg_block.1} parent=1 // pred_check
      _
    $region39: #{cg_block.1} parent=1 // pred_check_branch
      %90 = sbr.rel (0) target = $region41
    $region40: #{cg_block.1} parent=1 // pred_region
      %91 = dma.done [#allocation6], 1024
    $region41: #{cg_block.1} parent=1 // pred_fallthru
      _
    // Predicated region
    $region42: #{cg_block.1} parent=1 // pred_check
      _
    $region43: #{cg_block.1} parent=1 // pred_check_branch
      %93 = sbr.rel (0) target = $region45
    $region44: #{cg_block.1} parent=1 // pred_region
      %94 = dma.done [#allocation6], 1024
    $region45: #{cg_block.1} parent=1 // pred_fallthru
      _
    // Predicated region
    $region46: #{cg_block.1} parent=1 // pred_check
      _
    $region47: #{cg_block.1} parent=1 // pred_check_branch
      %96 = sbr.rel (0) target = $region49
    $region48: #{cg_block.1} parent=1 // pred_region
      %97 = dma.done [#allocation9], 1024
    $region49: #{cg_block.1} parent=1 // pred_fallthru
      _
    // Predicated region
    $region50: #{cg_block.1} parent=1 // pred_check
      _
    $region51: #{cg_block.1} parent=1 // pred_check_branch
      %99 = sbr.rel (0) target = $region53
    $region52: #{cg_block.1} parent=1 // pred_region
      %100 = dma.done [#allocation9], 1024
    $region53: #{cg_block.1} parent=1 // pred_fallthru
      _
    %v102 = vld [vmem:[#allocation2] sm:$0xf]
    %v103 = vld [vmem:[#allocation2 + $0x4] sm:$0xf]
    %v104 = vld [vmem:[#allocation2 + $0x8] sm:$0xf]
    %v105 = vld [vmem:[#allocation2 + $0xc] sm:$0xf]
    %v106 = vld [vmem:[#allocation2 + $0x10] sm:$0xf]
    %v107 = vld [vmem:[#allocation2 + $0x14] sm:$0xf]
    %v108 = vld [vmem:[#allocation2 + $0x18] sm:$0xf]
    %v109 = vld [vmem:[#allocation2 + $0x1c] sm:$0xf]
    %v110 = vld [vmem:[#allocation5] sm:$0xf]
    %v111 = vld [vmem:[#allocation5 + $0x4] sm:$0xf]
    %v112 = vld [vmem:[#allocation5 + $0x8] sm:$0xf]
    %v113 = vld [vmem:[#allocation5 + $0xc] sm:$0xf]
    %v114 = vld [vmem:[#allocation5 + $0x10] sm:$0xf]
    %v115 = vld [vmem:[#allocation5 + $0x14] sm:$0xf]
    %v116 = vld [vmem:[#allocation5 + $0x18] sm:$0xf]
    %v117 = vld [vmem:[#allocation5 + $0x1c] sm:$0xf]
    %v118 = vld [vmem:[#allocation5 + $0x20] sm:$0xf]
    %v119 = vld [vmem:[#allocation5 + $0x24] sm:$0xf]
    %v120 = vld [vmem:[#allocation5 + $0x28] sm:$0xf]
    %v121 = vld [vmem:[#allocation5 + $0x2c] sm:$0xf]
    %v122 = vld [vmem:[#allocation5 + $0x30] sm:$0xf]
    %v123 = vld [vmem:[#allocation5 + $0x34] sm:$0xf]
    %v124 = vld [vmem:[#allocation5 + $0x38] sm:$0xf]
    %v125 = vld [vmem:[#allocation5 + $0x3c] sm:$0xf]
    %v126 = vld [vmem:[%s4] sm:$0x1]
    %v127 = vlaneseq
    %v128 = vshrl.u32 %v127, 7
    %v129 = vsub.s32 0, %v128
    %v130 = vrot.slane %v126, %v129
    %v139 = vunpack.c.l.b16 %v102
    %v140 = vunpack.c.l.b16 %v103
    %v141 = vunpack.c.l.b16 %v104
    %v142 = vunpack.c.l.b16 %v105
    %v143 = vunpack.c.l.b16 %v106
    %v144 = vunpack.c.l.b16 %v107
    %v145 = vunpack.c.l.b16 %v108
    %v146 = vunpack.c.l.b16 %v109
    %v147 = vpack.c.b16 %v140, %v139
    %v148 = vpack.c.b16 %v142, %v141
    %v149 = vpack.c.b16 %v144, %v143
    %v150 = vpack.c.b16 %v146, %v145
    %v171 = vunpack.c.l.b16 %v110
    %v172 = vunpack.c.l.b16 %v111
    %v173 = vunpack.c.l.b16 %v112
    %v174 = vunpack.c.l.b16 %v113
    %v175 = vunpack.c.l.b16 %v114
    %v176 = vunpack.c.l.b16 %v115
    %v177 = vunpack.c.l.b16 %v116
    %v178 = vunpack.c.l.b16 %v117
    %v179 = vunpack.c.l.b16 %v118
    %v180 = vunpack.c.l.b16 %v119
    %v181 = vunpack.c.l.b16 %v120
    %v182 = vunpack.c.l.b16 %v121
    %v183 = vunpack.c.l.b16 %v122
    %v184 = vunpack.c.l.b16 %v123
    %v185 = vunpack.c.l.b16 %v124
    %v186 = vunpack.c.l.b16 %v125
    %v187 = vpack.c.b16 %v172, %v171
    %v188 = vpack.c.b16 %v174, %v173
    %v189 = vpack.c.b16 %v176, %v175
    %v190 = vpack.c.b16 %v178, %v177
    %v191 = vpack.c.b16 %v180, %v179
    %v192 = vpack.c.b16 %v182, %v181
    %v193 = vpack.c.b16 %v184, %v183
    %v194 = vpack.c.b16 %v186, %v185
    %203 = vmatprep.subr.bf16.mxu0 0
    %204 = vmatpush1.bf16.msra.mxu0 %v194
    %205 = vmatprep.subr.bf16.mxu0 0
    %206 = vmatpush1.bf16.msra.mxu0 %v193
    %207 = vmatprep.subr.bf16.mxu0 0
    %208 = vmatpush1.bf16.msra.mxu0 %v192
    %209 = vmatprep.subr.bf16.mxu0 0
    %210 = vmatpush1.bf16.msra.mxu0 %v191
    %211 = vmatprep.subr.bf16.mxu0 0
    %212 = vmatpush1.bf16.msra.mxu0 %v190
    %213 = vmatprep.subr.bf16.mxu0 0
    %214 = vmatpush1.bf16.msra.mxu0 %v189
    %215 = vmatprep.subr.bf16.mxu0 0
    %216 = vmatpush1.bf16.msra.mxu0 %v188
    %217 = vmatprep.subr.bf16.mxu0 0
    %218 = vmatpush1.bf16.msra.mxu0 %v187
    %219 = vmatprep.subr.bf16.mxu0 0
    %220 = vmatpush2.bf16.msra.mxu0 0
    %221 = vmatprep.subr.bf16.mxu0 0
    %222 = vmatpush2.bf16.msra.mxu0 0
    %223 = vmatprep.subr.bf16.mxu0 0
    %224 = vmatpush2.bf16.msra.mxu0 0
    %225 = vmatprep.subr.bf16.mxu0 0
    %226 = vmatpush2.bf16.msra.mxu0 0
    %227 = vmatprep.subr.bf16.mxu0 0
    %228 = vmatpush2.bf16.msra.mxu0 0
    %229 = vmatprep.subr.bf16.mxu0 0
    %230 = vmatpush2.bf16.msra.mxu0 0
    %231 = vmatprep.subr.bf16.mxu0 0
    %232 = vmatpush2.bf16.msra.mxu0 0
    %233 = vmatprep.subr.bf16.mxu0 0
    %234 = vmatpush2.bf16.msra.mxu0 0
    %235 = vmatprep.mubr.bf16.mxu0 0
    %236 = vmatmul.mubr.bf16.gmra.mxu0 %v147
    %v237 = vpop.f32.mrf.mxu0
    %v238 = vadd.f32 %v130, %v237
    %v239 = vpop.f32.mrf.mxu0
    %v240 = vpop.f32.mrf.mxu0
    %v241 = vadd.f32 %v130, %v240
    %v242 = vpop.f32.mrf.mxu0
    %243 = vmatprep.mubr.bf16.mxu0 0
    %244 = vmatmul.mubr.bf16.gmra.mxu0 %v148
    %v245 = vpop.f32.mrf.mxu0
    %v246 = vadd.f32 %v130, %v245
    %v247 = vpop.f32.mrf.mxu0
    %v248 = vpop.f32.mrf.mxu0
    %v249 = vadd.f32 %v130, %v248
    %v250 = vpop.f32.mrf.mxu0
    %251 = vmatprep.mubr.bf16.mxu0 0
    %252 = vmatmul.mubr.bf16.gmra.mxu0 %v149
    %v253 = vpop.f32.mrf.mxu0
    %v254 = vadd.f32 %v130, %v253
    %v255 = vpop.f32.mrf.mxu0
    %v256 = vpop.f32.mrf.mxu0
    %v257 = vadd.f32 %v130, %v256
    %v258 = vpop.f32.mrf.mxu0
    %259 = vmatprep.mubr.bf16.mxu0 0
    %260 = vmatmul.mubr.bf16.gmra.mxu0 %v150
    %v261 = vpop.f32.mrf.mxu0
    %v262 = vadd.f32 %v130, %v261
    %v263 = vpop.f32.mrf.mxu0
    %v264 = vpop.f32.mrf.mxu0
    %v265 = vadd.f32 %v130, %v264
    %v266 = vpop.f32.mrf.mxu0
    %267 = vdwg.mxu0
    %v268 = vmax.f32 %v238, 0.0
    %v269 = vmax.f32 %v241, 0.0
    %v270 = vmax.f32 %v246, 0.0
    %v271 = vmax.f32 %v249, 0.0
    %v272 = vmax.f32 %v254, 0.0
    %v273 = vmax.f32 %v257, 0.0
    %v274 = vmax.f32 %v262, 0.0
    %v275 = vmax.f32 %v265, 0.0
    %v276 = vpack.c.bf16 %v269, %v268
    %v277 = vpack.c.bf16 %v271, %v270
    %v278 = vpack.c.bf16 %v273, %v272
    %v279 = vpack.c.bf16 %v275, %v274
    %v280 = vld [vmem:[#allocation7] sm:$0xf]
    %v281 = vld [vmem:[#allocation7 + $0x4] sm:$0xf]
    %v282 = vld [vmem:[#allocation7 + $0x8] sm:$0xf]
    %v283 = vld [vmem:[#allocation7 + $0xc] sm:$0xf]
    %v284 = vld [vmem:[#allocation7 + $0x10] sm:$0xf]
    %v285 = vld [vmem:[#allocation7 + $0x14] sm:$0xf]
    %v286 = vld [vmem:[#allocation7 + $0x18] sm:$0xf]
    %v287 = vld [vmem:[#allocation7 + $0x1c] sm:$0xf]
    %v288 = vld [vmem:[#allocation7 + $0x20] sm:$0xf]
    %v289 = vld [vmem:[#allocation7 + $0x24] sm:$0xf]
    %v290 = vld [vmem:[#allocation7 + $0x28] sm:$0xf]
    %v291 = vld [vmem:[#allocation7 + $0x2c] sm:$0xf]
    %v292 = vld [vmem:[#allocation7 + $0x30] sm:$0xf]
    %v293 = vld [vmem:[#allocation7 + $0x34] sm:$0xf]
    %v294 = vld [vmem:[#allocation7 + $0x38] sm:$0xf]
    %v295 = vld [vmem:[#allocation7 + $0x3c] sm:$0xf]
    %v296 = vld [vmem:[%s4 + $0x1] sm:$0x1]
    %v297 = vlaneseq
    %v298 = vshrl.u32 %v297, 7
    %v299 = vsub.s32 0, %v298
    %v300 = vrot.slane %v296, %v299
    %v317 = vunpack.c.l.b16 %v280
    %v318 = vunpack.c.l.b16 %v281
    %v319 = vunpack.c.l.b16 %v282
    %v320 = vunpack.c.l.b16 %v283
    %v321 = vunpack.c.l.b16 %v284
    %v322 = vunpack.c.l.b16 %v285
    %v323 = vunpack.c.l.b16 %v286
    %v324 = vunpack.c.l.b16 %v287
    %v325 = vunpack.c.l.b16 %v288
    %v326 = vunpack.c.l.b16 %v289
    %v327 = vunpack.c.l.b16 %v290
    %v328 = vunpack.c.l.b16 %v291
    %v329 = vunpack.c.l.b16 %v292
    %v330 = vunpack.c.l.b16 %v293
    %v331 = vunpack.c.l.b16 %v294
    %v332 = vunpack.c.l.b16 %v295
    %v333 = vpack.c.b16 %v318, %v317
    %v334 = vpack.c.b16 %v320, %v319
    %v335 = vpack.c.b16 %v322, %v321
    %v336 = vpack.c.b16 %v324, %v323
    %v337 = vpack.c.b16 %v326, %v325
    %v338 = vpack.c.b16 %v328, %v327
    %v339 = vpack.c.b16 %v330, %v329
    %v340 = vpack.c.b16 %v332, %v331
    %349 = vmatprep.subr.bf16.mxu0 0
    %350 = vmatpush1.bf16.msra.mxu0 %v340
    %351 = vmatprep.subr.bf16.mxu0 0
    %352 = vmatpush1.bf16.msra.mxu0 %v339
    %353 = vmatprep.subr.bf16.mxu0 0
    %354 = vmatpush1.bf16.msra.mxu0 %v338
    %355 = vmatprep.subr.bf16.mxu0 0
    %356 = vmatpush1.bf16.msra.mxu0 %v337
    %357 = vmatprep.subr.bf16.mxu0 0
    %358 = vmatpush1.bf16.msra.mxu0 %v336
    %359 = vmatprep.subr.bf16.mxu0 0
    %360 = vmatpush1.bf16.msra.mxu0 %v335
    %361 = vmatprep.subr.bf16.mxu0 0
    %362 = vmatpush1.bf16.msra.mxu0 %v334
    %363 = vmatprep.subr.bf16.mxu0 0
    %364 = vmatpush1.bf16.msra.mxu0 %v333
    %365 = vmatprep.subr.bf16.mxu0 0
    %366 = vmatpush2.bf16.msra.mxu0 0
    %367 = vmatprep.subr.bf16.mxu0 0
    %368 = vmatpush2.bf16.msra.mxu0 0
    %369 = vmatprep.subr.bf16.mxu0 0
    %370 = vmatpush2.bf16.msra.mxu0 0
    %371 = vmatprep.subr.bf16.mxu0 0
    %372 = vmatpush2.bf16.msra.mxu0 0
    %373 = vmatprep.subr.bf16.mxu0 0
    %374 = vmatpush2.bf16.msra.mxu0 0
    %375 = vmatprep.subr.bf16.mxu0 0
    %376 = vmatpush2.bf16.msra.mxu0 0
    %377 = vmatprep.subr.bf16.mxu0 0
    %378 = vmatpush2.bf16.msra.mxu0 0
    %379 = vmatprep.subr.bf16.mxu0 0
    %380 = vmatpush2.bf16.msra.mxu0 0
    %381 = vmatprep.mubr.bf16.mxu0 0
    %382 = vmatmul.mubr.bf16.gmra.mxu0 %v276
    %v383 = vpop.f32.mrf.mxu0
    %v384 = vadd.f32 %v300, %v383
    %v385 = vpop.f32.mrf.mxu0
    %v386 = vpop.f32.mrf.mxu0
    %v387 = vadd.f32 %v300, %v386
    %v388 = vpop.f32.mrf.mxu0
    %389 = vmatprep.mubr.bf16.mxu0 0
    %390 = vmatmul.mubr.bf16.gmra.mxu0 %v277
    %v391 = vpop.f32.mrf.mxu0
    %v392 = vadd.f32 %v300, %v391
    %v393 = vpop.f32.mrf.mxu0
    %v394 = vpop.f32.mrf.mxu0
    %v395 = vadd.f32 %v300, %v394
    %v396 = vpop.f32.mrf.mxu0
    %397 = vmatprep.mubr.bf16.mxu0 0
    %398 = vmatmul.mubr.bf16.gmra.mxu0 %v278
    %v399 = vpop.f32.mrf.mxu0
    %v400 = vadd.f32 %v300, %v399
    %v401 = vpop.f32.mrf.mxu0
    %v402 = vpop.f32.mrf.mxu0
    %v403 = vadd.f32 %v300, %v402
    %v404 = vpop.f32.mrf.mxu0
    %405 = vmatprep.mubr.bf16.mxu0 0
    %406 = vmatmul.mubr.bf16.gmra.mxu0 %v279
    %v407 = vpop.f32.mrf.mxu0
    %v408 = vadd.f32 %v300, %v407
    %v409 = vpop.f32.mrf.mxu0
    %v410 = vpop.f32.mrf.mxu0
    %v411 = vadd.f32 %v300, %v410
    %v412 = vpop.f32.mrf.mxu0
    %413 = vdwg.mxu0
    %v414 = vld [vmem:[%s1] sm:$0x3]
    %v415 = vld [vmem:[#allocation8] sm:$0xf]
    %v416 = vld [vmem:[#allocation8 + $0x4] sm:$0xf]
    %v417 = vld [vmem:[#allocation8 + $0x8] sm:$0xf]
    %v418 = vld [vmem:[#allocation8 + $0xc] sm:$0xf]
    %v419 = vld [vmem:[#allocation8 + $0x10] sm:$0xf]
    %v420 = vld [vmem:[#allocation8 + $0x14] sm:$0xf]
    %v421 = vld [vmem:[#allocation8 + $0x18] sm:$0xf]
    %v422 = vld [vmem:[#allocation8 + $0x1c] sm:$0xf]
    %v423 = vld [vmem:[#allocation8 + $0x20] sm:$0xf]
    %v424 = vld [vmem:[#allocation8 + $0x24] sm:$0xf]
    %v425 = vld [vmem:[#allocation8 + $0x28] sm:$0xf]
    %v426 = vld [vmem:[#allocation8 + $0x2c] sm:$0xf]
    %v427 = vld [vmem:[#allocation8 + $0x30] sm:$0xf]
    %v428 = vld [vmem:[#allocation8 + $0x34] sm:$0xf]
    %v429 = vld [vmem:[#allocation8 + $0x38] sm:$0xf]
    %v430 = vld [vmem:[#allocation8 + $0x3c] sm:$0xf]
    %v431 = vld [vmem:[%s7] sm:$0x1]
    %v432 = vlaneseq
    %v433 = vshrl.u32 %v432, 7
    %v434 = vsub.s32 0, %v433
    %v435 = vrot.slane %v431, %v434
    %v452 = vunpack.c.l.b16 %v415
    %v453 = vunpack.c.l.b16 %v416
    %v454 = vunpack.c.l.b16 %v417
    %v455 = vunpack.c.l.b16 %v418
    %v456 = vunpack.c.l.b16 %v419
    %v457 = vunpack.c.l.b16 %v420
    %v458 = vunpack.c.l.b16 %v421
    %v459 = vunpack.c.l.b16 %v422
    %v460 = vunpack.c.l.b16 %v423
    %v461 = vunpack.c.l.b16 %v424
    %v462 = vunpack.c.l.b16 %v425
    %v463 = vunpack.c.l.b16 %v426
    %v464 = vunpack.c.l.b16 %v427
    %v465 = vunpack.c.l.b16 %v428
    %v466 = vunpack.c.l.b16 %v429
    %v467 = vunpack.c.l.b16 %v430
    %v468 = vpack.c.b16 %v453, %v452
    %v469 = vpack.c.b16 %v455, %v454
    %v470 = vpack.c.b16 %v457, %v456
    %v471 = vpack.c.b16 %v459, %v458
    %v472 = vpack.c.b16 %v461, %v460
    %v473 = vpack.c.b16 %v463, %v462
    %v474 = vpack.c.b16 %v465, %v464
    %v475 = vpack.c.b16 %v467, %v466
    %484 = vmatprep.subr.bf16.mxu0 0
    %485 = vmatpush1.bf16.msra.mxu0 %v475
    %486 = vmatprep.subr.bf16.mxu0 0
    %487 = vmatpush1.bf16.msra.mxu0 %v474
    %488 = vmatprep.subr.bf16.mxu0 0
    %489 = vmatpush1.bf16.msra.mxu0 %v473
    %490 = vmatprep.subr.bf16.mxu0 0
    %491 = vmatpush1.bf16.msra.mxu0 %v472
    %492 = vmatprep.subr.bf16.mxu0 0
    %493 = vmatpush1.bf16.msra.mxu0 %v471
    %494 = vmatprep.subr.bf16.mxu0 0
    %495 = vmatpush1.bf16.msra.mxu0 %v470
    %496 = vmatprep.subr.bf16.mxu0 0
    %497 = vmatpush1.bf16.msra.mxu0 %v469
    %498 = vmatprep.subr.bf16.mxu0 0
    %499 = vmatpush1.bf16.msra.mxu0 %v468
    %500 = vmatprep.subr.bf16.mxu0 0
    %501 = vmatpush2.bf16.msra.mxu0 0
    %502 = vmatprep.subr.bf16.mxu0 0
    %503 = vmatpush2.bf16.msra.mxu0 0
    %504 = vmatprep.subr.bf16.mxu0 0
    %505 = vmatpush2.bf16.msra.mxu0 0
    %506 = vmatprep.subr.bf16.mxu0 0
    %507 = vmatpush2.bf16.msra.mxu0 0
    %508 = vmatprep.subr.bf16.mxu0 0
    %509 = vmatpush2.bf16.msra.mxu0 0
    %510 = vmatprep.subr.bf16.mxu0 0
    %511 = vmatpush2.bf16.msra.mxu0 0
    %512 = vmatprep.subr.bf16.mxu0 0
    %513 = vmatpush2.bf16.msra.mxu0 0
    %514 = vmatprep.subr.bf16.mxu0 0
    %515 = vmatpush2.bf16.msra.mxu0 0
    %516 = vmatprep.mubr.bf16.mxu0 0
    %517 = vmatmul.mubr.bf16.gmra.mxu0 %v414
    %v518 = vpop.f32.mrf.mxu0
    %v519 = vadd.f32 %v435, %v518
    %v520 = vpop.f32.mrf.mxu0
    %v521 = vpop.f32.mrf.mxu0
    %v522 = vpop.f32.mrf.mxu0
    %523 = vdwg.mxu0
    %v524 = vmax.f32 %v519, 0.0
    %v525 = vpack.c.bf16 %v524, %v524
    %v526 = vld [vmem:[#allocation10] sm:$0xf]
    %v527 = vld [vmem:[#allocation10 + $0x4] sm:$0xf]
    %v528 = vld [vmem:[#allocation10 + $0x8] sm:$0xf]
    %v529 = vld [vmem:[#allocation10 + $0xc] sm:$0xf]
    %v530 = vld [vmem:[#allocation10 + $0x10] sm:$0xf]
    %v531 = vld [vmem:[#allocation10 + $0x14] sm:$0xf]
    %v532 = vld [vmem:[#allocation10 + $0x18] sm:$0xf]
    %v533 = vld [vmem:[#allocation10 + $0x1c] sm:$0xf]
    %v534 = vld [vmem:[#allocation10 + $0x20] sm:$0xf]
    %v535 = vld [vmem:[#allocation10 + $0x24] sm:$0xf]
    %v536 = vld [vmem:[#allocation10 + $0x28] sm:$0xf]
    %v537 = vld [vmem:[#allocation10 + $0x2c] sm:$0xf]
    %v538 = vld [vmem:[#allocation10 + $0x30] sm:$0xf]
    %v539 = vld [vmem:[#allocation10 + $0x34] sm:$0xf]
    %v540 = vld [vmem:[#allocation10 + $0x38] sm:$0xf]
    %v541 = vld [vmem:[#allocation10 + $0x3c] sm:$0xf]
    %v542 = vld [vmem:[%s7 + $0x1] sm:$0x1]
    %v543 = vlaneseq
    %v544 = vshrl.u32 %v543, 7
    %v545 = vsub.s32 0, %v544
    %v546 = vrot.slane %v542, %v545
    %v563 = vunpack.c.l.b16 %v526
    %v564 = vunpack.c.l.b16 %v527
    %v565 = vunpack.c.l.b16 %v528
    %v566 = vunpack.c.l.b16 %v529
    %v567 = vunpack.c.l.b16 %v530
    %v568 = vunpack.c.l.b16 %v531
    %v569 = vunpack.c.l.b16 %v532
    %v570 = vunpack.c.l.b16 %v533
    %v571 = vunpack.c.l.b16 %v534
    %v572 = vunpack.c.l.b16 %v535
    %v573 = vunpack.c.l.b16 %v536
    %v574 = vunpack.c.l.b16 %v537
    %v575 = vunpack.c.l.b16 %v538
    %v576 = vunpack.c.l.b16 %v539
    %v577 = vunpack.c.l.b16 %v540
    %v578 = vunpack.c.l.b16 %v541
    %v579 = vpack.c.b16 %v564, %v563
    %v580 = vpack.c.b16 %v566, %v565
    %v581 = vpack.c.b16 %v568, %v567
    %v582 = vpack.c.b16 %v570, %v569
    %v583 = vpack.c.b16 %v572, %v571
    %v584 = vpack.c.b16 %v574, %v573
    %v585 = vpack.c.b16 %v576, %v575
    %v586 = vpack.c.b16 %v578, %v577
    %595 = vmatprep.subr.bf16.mxu0 0
    %596 = vmatpush1.bf16.msra.mxu0 %v586
    %597 = vmatprep.subr.bf16.mxu0 0
    %598 = vmatpush1.bf16.msra.mxu0 %v585
    %599 = vmatprep.subr.bf16.mxu0 0
    %600 = vmatpush1.bf16.msra.mxu0 %v584
    %601 = vmatprep.subr.bf16.mxu0 0
    %602 = vmatpush1.bf16.msra.mxu0 %v583
    %603 = vmatprep.subr.bf16.mxu0 0
    %604 = vmatpush1.bf16.msra.mxu0 %v582
    %605 = vmatprep.subr.bf16.mxu0 0
    %606 = vmatpush1.bf16.msra.mxu0 %v581
    %607 = vmatprep.subr.bf16.mxu0 0
    %608 = vmatpush1.bf16.msra.mxu0 %v580
    %609 = vmatprep.subr.bf16.mxu0 0
    %610 = vmatpush1.bf16.msra.mxu0 %v579
    %611 = vmatprep.subr.bf16.mxu0 0
    %612 = vmatpush2.bf16.msra.mxu0 0
    %613 = vmatprep.subr.bf16.mxu0 0
    %614 = vmatpush2.bf16.msra.mxu0 0
    %615 = vmatprep.subr.bf16.mxu0 0
    %616 = vmatpush2.bf16.msra.mxu0 0
    %617 = vmatprep.subr.bf16.mxu0 0
    %618 = vmatpush2.bf16.msra.mxu0 0
    %619 = vmatprep.subr.bf16.mxu0 0
    %620 = vmatpush2.bf16.msra.mxu0 0
    %621 = vmatprep.subr.bf16.mxu0 0
    %622 = vmatpush2.bf16.msra.mxu0 0
    %623 = vmatprep.subr.bf16.mxu0 0
    %624 = vmatpush2.bf16.msra.mxu0 0
    %625 = vmatprep.subr.bf16.mxu0 0
    %626 = vmatpush2.bf16.msra.mxu0 0
    %627 = vmatprep.mubr.bf16.mxu0 0
    %628 = vmatmul.mubr.bf16.gmra.mxu0 %v525
    %v629 = vpop.f32.mrf.mxu0
    %v630 = vadd.f32 %v546, %v629
    %v631 = vpop.f32.mrf.mxu0
    %v632 = vpop.f32.mrf.mxu0
    %v633 = vpop.f32.mrf.mxu0
    %634 = vdwg.mxu0
    %v637 = vunpack.c.l.s4 1966171168
    %v638 = vunpack.c.0.s8 %v637
    %v639 = vlaneseq
    %v640 = vshrl.u32 %v639, 7
    %v641 = vsub.s32 %v638, %v640
    %v642 = vrot.slane %v630, %v641
    %v643 = vcombine.high %v642, %v642
    %v645 = vunpack.c.l.s4 1966171168
    %v646 = vunpack.c.0.s8 %v645
    %v647 = vlaneseq
    %v648 = vshrl.u32 %v647, 7
    %v649 = vsub.s32 %v646, %v648
    %v650 = vrot.slane %v642, %v649
    %v652 = vunpack.c.l.s4 1966171168
    %v653 = vunpack.c.0.s8 %v652
    %v654 = vlaneseq
    %v655 = vshrl.u32 %v654, 7
    %v656 = vsub.s32 %v653, %v655
    %v657 = vrot.slane %v643, %v656
    %v658 = vcombine.high %v650, %v650
    %v659 = vcombine.high %v657, %v657
    %v660 = vlaneseq
    %v661 = vshrl.u32 %v660, 7
    %v662 = vsub.s32 0, %v661
    %v663 = vrot.slane %v650, %v662
    %v664 = vlaneseq
    %v665 = vshrl.u32 %v664, 7
    %v666 = vsub.s32 0, %v665
    %v667 = vrot.slane %v657, %v666
    %v668 = vlaneseq
    %v669 = vshrl.u32 %v668, 7
    %v670 = vsub.s32 0, %v669
    %v671 = vrot.slane %v658, %v670
    %v672 = vlaneseq
    %v673 = vshrl.u32 %v672, 7
    %v674 = vsub.s32 0, %v673
    %v675 = vrot.slane %v659, %v674
    %v680 = vmul.f32 %v384, %v663
    %v681 = vmul.f32 %v387, %v663
    %v682 = vmul.f32 %v392, %v667
    %v683 = vmul.f32 %v395, %v667
    %v684 = vmul.f32 %v400, %v671
    %v685 = vmul.f32 %v403, %v671
    %v686 = vmul.f32 %v408, %v675
    %v687 = vmul.f32 %v411, %v675
    %v688 = vmax.f32 %v680, %v681
    %v689 = vrot.slane %v688, 4
    %v690 = vmax.f32 %v688, %v689
    %v691 = vrot.slane %v690, 2
    %v692 = vmax.f32 %v690, %v691
    %v693 = vrot.slane %v692, 1
    %v694 = vmax.f32 %v692, %v693
    %v695 = vmax.f32 %v682, %v683
    %v696 = vrot.slane %v695, 4
    %v697 = vmax.f32 %v695, %v696
    %v698 = vrot.slane %v697, 2
    %v699 = vmax.f32 %v697, %v698
    %v700 = vrot.slane %v699, 1
    %v701 = vmax.f32 %v699, %v700
    %v702 = vmax.f32 %v684, %v685
    %v703 = vrot.slane %v702, 4
    %v704 = vmax.f32 %v702, %v703
    %v705 = vrot.slane %v704, 2
    %v706 = vmax.f32 %v704, %v705
    %v707 = vrot.slane %v706, 1
    %v708 = vmax.f32 %v706, %v707
    %v709 = vmax.f32 %v686, %v687
    %v710 = vrot.slane %v709, 4
    %v711 = vmax.f32 %v709, %v710
    %v712 = vrot.slane %v711, 2
    %v713 = vmax.f32 %v711, %v712
    %v714 = vrot.slane %v713, 1
    %v715 = vmax.f32 %v713, %v714
    %v716 = vpack.c.bf16 %v681, %v680
    %v717 = vpack.c.bf16 %v683, %v682
    %v718 = vpack.c.bf16 %v685, %v684
    %v719 = vpack.c.bf16 %v687, %v686
    %v724 = vunpack.c.l.b16 %v716
    %v725 = vunpack.c.h.b16 %v716
    %v726 = vunpack.c.l.b16 %v717
    %v727 = vunpack.c.h.b16 %v717
    %v728 = vunpack.c.l.b16 %v718
    %v729 = vunpack.c.h.b16 %v718
    %v730 = vunpack.c.l.b16 %v719
    %v731 = vunpack.c.h.b16 %v719
    %v732 = vpack.c.b16 %v724, %v724
    %v733 = vpack.c.b16 %v725, %v725
    %v734 = vpack.c.b16 %v726, %v726
    %v735 = vpack.c.b16 %v727, %v727
    %v736 = vpack.c.b16 %v728, %v728
    %v737 = vpack.c.b16 %v729, %v729
    %v738 = vpack.c.b16 %v730, %v730
    %v739 = vpack.c.b16 %v731, %v731
    %748 = vst [vmem:[#allocation11] sm:$0xf] %v732
    %749 = vst [vmem:[#allocation11 + $0x4] sm:$0xf] %v733
    %750 = vst [vmem:[#allocation11 + $0x8] sm:$0xf] %v734
    %751 = vst [vmem:[#allocation11 + $0xc] sm:$0xf] %v735
    %752 = vst [vmem:[#allocation11 + $0x10] sm:$0xf] %v736
    %753 = vst [vmem:[#allocation11 + $0x14] sm:$0xf] %v737
    %754 = vst [vmem:[#allocation11 + $0x18] sm:$0xf] %v738
    %755 = vst [vmem:[#allocation11 + $0x1c] sm:$0xf] %v739
    %v756 = vpack.c.bf16 %v694, %v694
    %v757 = vpack.c.bf16 %v701, %v701
    %v758 = vpack.c.bf16 %v708, %v708
    %v759 = vpack.c.bf16 %v715, %v715
    %v765 = vunpack.c.l.s4 1983009808
    %v766 = vunpack.c.0.s8 %v765
    %v767 = vlaneseq
    %v768 = vshrl.u32 %v767, 7
    %v769 = vsub.s32 %v766, %v768
    %v770 = vrot.slane %v756, %v769
    %v772 = vunpack.c.l.s4 1983009808
    %v773 = vunpack.c.0.s8 %v772
    %v774 = vlaneseq
    %v775 = vshrl.u32 %v774, 7
    %v776 = vsub.s32 %v773, %v775
    %v777 = vrot.slane %v757, %v776
    %v779 = vunpack.c.l.s4 1983009808
    %v780 = vunpack.c.0.s8 %v779
    %v781 = vlaneseq
    %v782 = vshrl.u32 %v781, 7
    %v783 = vsub.s32 %v780, %v782
    %v784 = vrot.slane %v758, %v783
    %v786 = vunpack.c.l.s4 1983009808
    %v787 = vunpack.c.0.s8 %v786
    %v788 = vlaneseq
    %v789 = vshrl.u32 %v788, 7
    %v790 = vsub.s32 %v787, %v789
    %v791 = vrot.slane %v759, %v790
    %v793 = vunpack.c.l.s4 1983009808
    %v794 = vunpack.c.0.s8 %v793
    %v795 = vlaneseq
    %v796 = vshrl.u32 %v795, 7
    %v797 = vsub.s32 %v794, %v796
    %v798 = vrot.slane %v770, %v797
    %v800 = vunpack.c.l.s4 1983009808
    %v801 = vunpack.c.0.s8 %v800
    %v802 = vlaneseq
    %v803 = vshrl.u32 %v802, 7
    %v804 = vsub.s32 %v801, %v803
    %v805 = vrot.slane %v777, %v804
    %v807 = vunpack.c.l.s4 1983009808
    %v808 = vunpack.c.0.s8 %v807
    %v809 = vlaneseq
    %v810 = vshrl.u32 %v809, 7
    %v811 = vsub.s32 %v808, %v810
    %v812 = vrot.slane %v784, %v811
    %v814 = vunpack.c.l.s4 1983009808
    %v815 = vunpack.c.0.s8 %v814
    %v816 = vlaneseq
    %v817 = vshrl.u32 %v816, 7
    %v818 = vsub.s32 %v815, %v817
    %v819 = vrot.slane %v791, %v818
    %v820 = vunpack.c.l.b16 %v798
    %v821 = vunpack.c.l.b16 %v805
    %v822 = vunpack.c.l.b16 %v812
    %v823 = vunpack.c.l.b16 %v819
    %v824 = vrot.slane %v821, 7
    %vm825 = vcmask 1041409
    %v826 = vsel %vm825, %v824, %v820
    %v827 = vrot.slane %v822, 6
    %vm828 = vcmask 1042434
    %v829 = vsel %vm828, %v827, %v826
    %v830 = vrot.slane %v823, 5
    %vm831 = vcmask 1043459
    %v832 = vsel %vm831, %v830, %v829
    %v833 = vpack.c.b16 %v832, %v832
    %v835 = vunpack.c.l.s4 1983009808
    %v836 = vunpack.c.0.s8 %v835
    %v837 = vlaneseq
    %v838 = vshrl.u32 %v837, 7
    %v839 = vsub.s32 %v836, %v838
    %v840 = vrot.slane %v833, %v839
    %842 = vst [vmem:[#allocation12] sm:$0x3] %v840
    // Predicated region
    $region54: #{cg_block.1} parent=1 // pred_check
      _
    $region55: #{cg_block.1} parent=1 // pred_check_branch
      %844 = sbr.rel (0) target = $region57
    $region56: #{cg_block.1} parent=1 // pred_region
      %s846 = ssub.s32 512, 512
      %847 = vsyncadd [#allocation4], %s846
      %s848 = sshll.u32 [#allocation11], 4
      %s849 = int_to_ptr.vmem [resolvable:$true] %s848
      %854 = dma.vmem_to_hbm [thread:$0]  %s849, 512, %s8, [#allocation4], 64, 64, 4
    $region57: #{cg_block.1} parent=1 // pred_fallthru
      _
    // Predicated region
    $region58: #{cg_block.1} parent=1 // pred_check
      _
    $region59: #{cg_block.1} parent=1 // pred_check_branch
      %856 = sbr.rel (0) target = $region61
    $region60: #{cg_block.1} parent=1 // pred_region
      %s858 = ssub.s32 32, 32
      %859 = vsyncadd [#allocation13], %s858
      %s861 = sshll.u32 [#allocation12], 4
      %s862 = int_to_ptr.vmem [resolvable:$true] %s861
      %864 = dma.vmem_to_hbm [thread:$0]  %s862, 32, %s9, [#allocation13]
    $region61: #{cg_block.1} parent=1 // pred_fallthru
      _
    // Predicated region
    $region62: #{cg_block.1} parent=1 // pred_check
      _
    $region63: #{cg_block.1} parent=1 // pred_check_branch
      %866 = sbr.rel (0) target = $region65
    $region64: #{cg_block.1} parent=1 // pred_region
      %867 = dma.done [#allocation4], 512
    $region65: #{cg_block.1} parent=1 // pred_fallthru
      _
    // Predicated region
    $region66: #{cg_block.1} parent=1 // pred_check
      _
    $region67: #{cg_block.1} parent=1 // pred_check_branch
      %869 = sbr.rel (0) target = $region69
    $region68: #{cg_block.1} parent=1 // pred_region
      %870 = dma.done [#allocation13], 32
    $region69: #{cg_block.1} parent=1 // pred_fallthru
      _
    %871 = vsyncpa [#allocation3], 1
    %872 = vsyncpa [#allocation6], 1
    %873 = vsyncpa [#allocation9], 1
    %874 = vsyncpa [#allocation4], 1
    %875 = vsyncpa [#allocation13], 1

</llo_original>
